<compile_context>
chip_gen: v7x
topology: tpu7x:2x2x1
jax: 0.10.0
libtpu: 0.0.40
codegen_flags: <defaults>
</compile_context>

<pallas_src>
import functools

import jax
import jax.numpy as jnp
import numpy as np
from jax.experimental import pallas as pl
from jax.experimental.pallas import tpu as pltpu


def _round_up(x, m):
    return ((x + m - 1) // m) * m


def _contrastive_loss_kernel(text_ref, event_ref, label_ref, weight_ref,
                             colbias_ref, loss_ref, *, inv_temp):
    i = pl.program_id(0)

    @pl.when(i == 0)
    def _init():
        loss_ref[...] = jnp.zeros_like(loss_ref)

    eps = jnp.float32(1e-12)  # F.normalize(p=2, eps=1e-12): x / max(||x||, eps)

    text = text_ref[0].astype(jnp.float32)      # (T_pad, D_pad), this video's text rows
    event_t = event_ref[0].astype(jnp.float32)  # (D_pad, M_pad), this video's events (transposed)

    # rsqrt-based row-wise L2 normalization (same clamp semantics as F.normalize).
    t_ss = jnp.sum(text * text, axis=1, keepdims=True)          # (T_pad, 1)
    tn = text * jax.lax.rsqrt(jnp.maximum(t_ss, eps * eps))
    e_ss = jnp.sum(event_t * event_t, axis=0, keepdims=True)    # (1, M_pad)
    en = event_t * jax.lax.rsqrt(jnp.maximum(e_ss, eps * eps))

    # Plain (T,D)@(D,M) MXU contraction; bf16 operands, f32 accumulation.
    logits = jnp.dot(tn.astype(jnp.bfloat16), en.astype(jnp.bfloat16),
                     preferred_element_type=jnp.float32) * jnp.float32(inv_temp)

    # Exclude padded event columns from the softmax (bias is 0 on real columns).
    masked = logits + colbias_ref[...]                           # (T_pad, M_pad)

    # Per-row cross entropy over this video's M columns.
    row_max = jnp.max(masked, axis=1, keepdims=True)
    exp_sum = jnp.sum(jnp.exp(masked - row_max), axis=1, keepdims=True)
    lse = row_max + jnp.log(exp_sum)                             # (T_pad, 1)

    col_ids = jax.lax.broadcasted_iota(jnp.int32, masked.shape, 1)
    onehot = (col_ids == label_ref[0]).astype(jnp.float32)       # labels are local (0..M-1)
    label_logit = jnp.sum(masked * onehot, axis=1, keepdims=True)

    ce = lse - label_logit                                       # (T_pad, 1)
    # weight = 1/(B * n_i) on real rows, 0 on padded rows  =>  sum reproduces
    # sum_i mean(CE_i) / B of the PyTorch module.
    loss_ref[...] += jnp.sum(ce * weight_ref[0])


def contrastive_criterion_forward(text_embed_list, event_embed, matching_indices,
                                  temperature=0.1):
    """JAX/Pallas equivalent of ContrastiveCriterion.forward (default flags)."""
    B, M, D = event_embed.shape
    D_pad = _round_up(D, 128)
    M_pad = _round_up(M, 128)

    n_list = [len(np.asarray(f)) for f, _ in matching_indices]
    T_pad = _round_up(max(max(n_list), 1), 8)

    # Host/trace-time ragged preprocessing (mirrors the PyTorch module's Python loop):
    # gather caption rows per video, pad each video to T_pad rows, build labels/weights.
    text_np = np.zeros((B, T_pad, D_pad), np.float32)
    label_np = np.zeros((B, T_pad, 1), np.int32)
    weight_np = np.zeros((B, T_pad, 1), np.float32)
    for i, (feat_ids, cap_ids) in enumerate(matching_indices):
        feat_ids = np.asarray(feat_ids, np.int32)
        cap_ids = np.asarray(cap_ids, np.int32)
        n = len(feat_ids)
        if n == 0:
            # PyTorch would produce NaN here (mean over zero rows); we skip the video.
            continue
        text_np[i, :n, :D] = np.asarray(text_embed_list[i])[cap_ids]
        label_np[i, :n, 0] = feat_ids                 # local column index within video i
        weight_np[i, :n, 0] = 1.0 / (B * n)

    # Events pre-transposed per video: (B, D_pad, M_pad), zero-padded.
    event_t_np = np.zeros((B, D_pad, M_pad), np.float32)
    event_t_np[:, :D, :M] = np.transpose(np.asarray(event_embed, np.float32), (0, 2, 1))

    # Additive column bias: 0 on real event columns, -1e30 on padded ones.
    col_bias_np = np.full((1, M_pad), -1e30, np.float32)
    col_bias_np[0, :M] = 0.0

    kernel = functools.partial(_contrastive_loss_kernel, inv_temp=1.0 / temperature)

    loss = pl.pallas_call(
        kernel,
        out_shape=jax.ShapeDtypeStruct((1, 1), jnp.float32),
        grid_spec=pltpu.PrefetchScalarGridSpec(
            num_scalar_prefetch=0,
            grid=(B,),
            in_specs=[
                pl.BlockSpec((1, T_pad, D_pad), lambda i: (i, 0, 0)),  # text rows of video i
                pl.BlockSpec((1, D_pad, M_pad), lambda i: (i, 0, 0)),  # events of video i (T)
                pl.BlockSpec((1, T_pad, 1), lambda i: (i, 0, 0)),      # labels
                pl.BlockSpec((1, T_pad, 1), lambda i: (i, 0, 0)),      # weights
                pl.BlockSpec((1, M_pad), lambda i: (0, 0)),            # column bias (resident)
            ],
            out_specs=pl.BlockSpec((1, 1), lambda i: (0, 0)),          # resident accumulator
        ),
        compiler_params=pltpu.CompilerParams(
            dimension_semantics=("arbitrary",)),
        cost_estimate=pl.CostEstimate(
            flops=int(2 * B * T_pad * D_pad * M_pad),
            transcendentals=int(B * T_pad * (M_pad + 2)),
            bytes_accessed=int(4 * B * (T_pad * D_pad + D_pad * M_pad + 2 * T_pad))),
    )(jnp.asarray(text_np), jnp.asarray(event_t_np), jnp.asarray(label_np),
      jnp.asarray(weight_np), jnp.asarray(col_bias_np))
    return loss[0, 0]


def _reference_loss(text_embed_list, event_embed, matching_indices, temperature=0.1):
    """Pure-JAX f32 reference mirroring the PyTorch module (default flags)."""
    B, M, D = event_embed.shape
    ev = event_embed.reshape(B * M, D)

    def l2n(x):
        n = jnp.sqrt(jnp.sum(x * x, axis=1, keepdims=True))
        return x / jnp.maximum(n, 1e-12)

    texts = [text_embed_list[i][np.asarray(c, np.int32)]
             for i, (_, c) in enumerate(matching_indices)]
    text = jnp.concatenate(texts, axis=0)
    logits = l2n(text) @ l2n(ev).T / temperature

    total, base = 0.0, 0
    for i, (feat_ids, _) in enumerate(matching_indices):
        n = len(feat_ids)
        cur = logits[base:base + n, i * M:(i + 1) * M]
        lab = jnp.asarray(feat_ids, jnp.int32)
        lse = jax.scipy.special.logsumexp(cur, axis=1)
        ce = lse - cur[jnp.arange(n), lab]
        total = total + jnp.mean(ce)
        base += n
    return total / B


if __name__ == "__main__":
    key = jax.random.PRNGKey(0)
    B, M, D = 2, 8, 32  # batch, max_event_num, contrastive_hidden_size

    k_ev, k_t0, k_t1 = jax.random.split(key, 3)
    event_embed = jax.random.normal(k_ev, (B, M, D), dtype=jnp.float32)

    # matching_indices: per-video (feat_ids, cap_ids); per-video caption features.
    matching_indices = [
        (np.array([1, 4, 6], np.int32), np.array([2, 0, 1], np.int32)),
        (np.array([0, 2, 3, 5, 7], np.int32), np.array([4, 1, 0, 3, 2], np.int32)),
    ]
    text_embed_list = [
        jax.random.normal(k_t0, (3, D), dtype=jnp.float32),
        jax.random.normal(k_t1, (5, D), dtype=jnp.float32),
    ]

    loss = contrastive_criterion_forward(text_embed_list, event_embed,
                                         matching_indices, temperature=0.1)
    loss = jax.block_until_ready(loss)

    ref = jax.block_until_ready(
        _reference_loss(text_embed_list, event_embed, matching_indices, 0.1))
    # bf16 operands into the MXU shift logits by ~1e-3 -> relaxed tolerance vs f32 ref.
    np.testing.assert_allclose(np.asarray(loss), np.asarray(ref),
                               rtol=1e-2, atol=1e-2)

    print("KERNEL_OK")
</pallas_src>

<mosaic_0001>
module attributes {stable_mosaic.version = 11 : i64} {
  func.func @_contrastive_loss_kernel(%arg0: i32, %arg1: memref<1x8x128xf32, #tpu.memory_space<vmem>>, %arg2: memref<1x128x128xf32, #tpu.memory_space<vmem>>, %arg3: memref<1x8x1xi32, #tpu.memory_space<vmem>>, %arg4: memref<1x8x1xf32, #tpu.memory_space<vmem>>, %arg5: memref<1x128xf32, #tpu.memory_space<vmem>>, %arg6: memref<1x1xf32, #tpu.memory_space<vmem>>) attributes {dimension_semantics = [#tpu.dimension_semantics<arbitrary>], iteration_bounds = array<i64: 2>, scalar_prefetch = 0 : i64, scratch_operands = 0 : i64, tpu.core_type = #tpu.core_type<tc>, window_params = [{transform_indices = @transform_0, window_bounds = array<i64: 1, 8, 128>}, {transform_indices = @transform_1, window_bounds = array<i64: 1, 128, 128>}, {transform_indices = @transform_2, window_bounds = array<i64: 1, 8, 1>}, {transform_indices = @transform_3, window_bounds = array<i64: 1, 8, 1>}, {pipeline_mode = #tpu.pipeline_mode<synchronous>, transform_indices = @transform_4, window_bounds = array<i64: 1, 128>}, {pipeline_mode = #tpu.pipeline_mode<synchronous>, transform_indices = @transform_5, window_bounds = array<i64: 1, 1>}]} {
    %c0_i32 = arith.constant 0 : i32
    %0 = arith.cmpi eq, %arg0, %c0_i32 : i32
    %1 = arith.extui %0 : i1 to i32
    %c0_i32_0 = arith.constant 0 : i32
    %2 = arith.cmpi ne, %1, %c0_i32_0 : i32
    scf.if %2 {
      %cst_29 = arith.constant 0.000000e+00 : f32
      %64 = vector.broadcast %cst_29 : f32 to vector<1x1xf32>
      %c0_30 = arith.constant 0 : index
      %c0_31 = arith.constant 0 : index
      %65 = vector.load %arg6[%c0_30, %c0_31] : memref<1x1xf32, #tpu.memory_space<vmem>>, vector<1x1xf32>
      tpu.vector_store %arg6[%c0_30, %c0_31], %64 {strides = array<i32>} : memref<1x1xf32, #tpu.memory_space<vmem>>, vector<1x1xf32>,
    } else {
    }
    %c0 = arith.constant 0 : index
    %c0_1 = arith.constant 0 : index
    %c0_2 = arith.constant 0 : index
    %3 = vector.load %arg1[%c0, %c0_1, %c0_2] : memref<1x8x128xf32, #tpu.memory_space<vmem>>, vector<1x8x128xf32>
    %4 = vector.shape_cast %3 : vector<1x8x128xf32> to vector<8x128xf32>
    %c0_3 = arith.constant 0 : index
    %c0_4 = arith.constant 0 : index
    %c0_5 = arith.constant 0 : index
    %5 = vector.load %arg2[%c0_3, %c0_4, %c0_5] : memref<1x128x128xf32, #tpu.memory_space<vmem>>, vector<1x128x128xf32>
    %6 = vector.shape_cast %5 : vector<1x128x128xf32> to vector<128x128xf32>
    %7 = arith.mulf %4, %4 : vector<8x128xf32>
    %cst = arith.constant dense<0.000000e+00> : vector<8xf32>
    %8 = vector.multi_reduction <add>, %7, %cst [1] : vector<8x128xf32> to vector<8xf32>
    %9 = vector.shape_cast %8 : vector<8xf32> to vector<8x1xf32>
    %cst_6 = arith.constant 9.99999996E-13 : f32
    %cst_7 = arith.constant 9.99999996E-13 : f32
    %10 = arith.mulf %cst_6, %cst_7 : f32
    %11 = vector.broadcast %10 : f32 to vector<8x1xf32>
    %12 = arith.maximumf %9, %11 : vector<8x1xf32>
    %13 = math.rsqrt %12 : vector<8x1xf32>
    %14 = vector.broadcast %13 : vector<8x1xf32> to vector<8x128xf32>
    %15 = arith.mulf %4, %14 : vector<8x128xf32>
    %16 = arith.mulf %6, %6 : vector<128x128xf32>
    %cst_8 = arith.constant dense<0.000000e+00> : vector<128xf32>
    %17 = vector.multi_reduction <add>, %16, %cst_8 [0] : vector<128x128xf32> to vector<128xf32>
    %18 = vector.shape_cast %17 : vector<128xf32> to vector<1x128xf32>
    %cst_9 = arith.constant 9.99999996E-13 : f32
    %cst_10 = arith.constant 9.99999996E-13 : f32
    %19 = arith.mulf %cst_9, %cst_10 : f32
    %20 = vector.broadcast %19 : f32 to vector<1x128xf32>
    %21 = arith.maximumf %18, %20 : vector<1x128xf32>
    %22 = math.rsqrt %21 : vector<1x128xf32>
    %23 = vector.broadcast %22 : vector<1x128xf32> to vector<128x128xf32>
    %24 = arith.mulf %6, %23 : vector<128x128xf32>
    %25 = arith.truncf %15 : vector<8x128xf32> to vector<8x128xbf16>
    %26 = arith.truncf %24 : vector<128x128xf32> to vector<128x128xbf16>
    %cst_11 = arith.constant dense<0.000000e+00> : vector<8x128xf32>
    %27 = tpu.matmul %25, %26, %cst_11 {dimension_numbers = #tpu.dot_dimension_numbers<[1], [0], [0], [1], [0, 0, 1, 1], [], []>} : vector<8x128xbf16>, vector<128x128xbf16>, vector<8x128xf32> -> vector<8x128xf32>
    %cst_12 = arith.constant 1.000000e+01 : f32
    %28 = vector.broadcast %cst_12 : f32 to vector<8x128xf32>
    %29 = arith.mulf %27, %28 : vector<8x128xf32>
    %c0_13 = arith.constant 0 : index
    %c0_14 = arith.constant 0 : index
    %30 = vector.load %arg5[%c0_13, %c0_14] : memref<1x128xf32, #tpu.memory_space<vmem>>, vector<1x128xf32>
    %31 = vector.broadcast %30 : vector<1x128xf32> to vector<8x128xf32>
    %32 = arith.addf %29, %31 : vector<8x128xf32>
    %cst_15 = arith.constant dense<0xFF800000> : vector<8xf32>
    %33 = vector.multi_reduction <maximumf>, %32, %cst_15 [1] : vector<8x128xf32> to vector<8xf32>
    %34 = vector.shape_cast %33 : vector<8xf32> to vector<8x1xf32>
    %35 = vector.broadcast %34 : vector<8x1xf32> to vector<8x128xf32>
    %36 = arith.subf %32, %35 : vector<8x128xf32>
    %37 = math.exp %36 : vector<8x128xf32>
    %cst_16 = arith.constant dense<0.000000e+00> : vector<8xf32>
    %38 = vector.multi_reduction <add>, %37, %cst_16 [1] : vector<8x128xf32> to vector<8xf32>
    %39 = vector.shape_cast %38 : vector<8xf32> to vector<8x1xf32>
    %40 = math.log %39 : vector<8x1xf32>
    %41 = arith.addf %34, %40 : vector<8x1xf32>
    %42 = tpu.iota {dimensions = array<i32: 1>} : vector<8x128xi32>
    %c0_17 = arith.constant 0 : index
    %c0_18 = arith.constant 0 : index
    %c0_19 = arith.constant 0 : index
    %43 = vector.load %arg3[%c0_17, %c0_18, %c0_19] : memref<1x8x1xi32, #tpu.memory_space<vmem>>, vector<1x8x1xi32>
    %44 = vector.shape_cast %43 : vector<1x8x1xi32> to vector<8x1xi32>
    %45 = vector.broadcast %44 : vector<8x1xi32> to vector<8x128xi32>
    %46 = arith.cmpi eq, %42, %45 : vector<8x128xi32>
    %47 = arith.extui %46 : vector<8x128xi1> to vector<8x128xi32>
    %48 = arith.sitofp %47 : vector<8x128xi32> to vector<8x128xf32>
    %49 = arith.mulf %32, %48 : vector<8x128xf32>
    %cst_20 = arith.constant dense<0.000000e+00> : vector<8xf32>
    %50 = vector.multi_reduction <add>, %49, %cst_20 [1] : vector<8x128xf32> to vector<8xf32>
    %51 = vector.shape_cast %50 : vector<8xf32> to vector<8x1xf32>
    %52 = arith.subf %41, %51 : vector<8x1xf32>
    %c0_21 = arith.constant 0 : index
    %c0_22 = arith.constant 0 : index
    %53 = vector.load %arg6[%c0_21, %c0_22] : memref<1x1xf32, #tpu.memory_space<vmem>>, vector<1x1xf32>
    %c0_23 = arith.constant 0 : index
    %c0_24 = arith.constant 0 : index
    %c0_25 = arith.constant 0 : index
    %54 = vector.load %arg4[%c0_23, %c0_24, %c0_25] : memref<1x8x1xf32, #tpu.memory_space<vmem>>, vector<1x8x1xf32>
    %55 = vector.shape_cast %54 : vector<1x8x1xf32> to vector<8x1xf32>
    %56 = arith.mulf %52, %55 : vector<8x1xf32>
    %57 = vector.shape_cast %56 : vector<8x1xf32> to vector<1x8x1xf32>
    %cst_26 = arith.constant dense<0.000000e+00> : vector<1xf32>
    %58 = vector.multi_reduction <add>, %57, %cst_26 [1, 2] : vector<1x8x1xf32> to vector<1xf32>
    %59 = vector.shape_cast %58 : vector<1xf32> to vector<1x1x1xf32>
    %60 = vector.extract %59[0, 0, 0] : f32 from vector<1x1x1xf32>
    %61 = vector.broadcast %60 : f32 to vector<1x1xf32>
    %62 = arith.addf %53, %61 : vector<1x1xf32>
    %c0_27 = arith.constant 0 : index
    %c0_28 = arith.constant 0 : index
    %63 = vector.load %arg6[%c0_27, %c0_28] : memref<1x1xf32, #tpu.memory_space<vmem>>, vector<1x1xf32>
    tpu.vector_store %arg6[%c0_27, %c0_28], %62 {strides = array<i32>} : memref<1x1xf32, #tpu.memory_space<vmem>>, vector<1x1xf32>,
    return
  }
  func.func @transform_0(%arg0: i32) -> (i32, i32, i32) {
    %c0_i32 = arith.constant 0 : i32
    %c0_i32_0 = arith.constant 0 : i32
    %c0_i32_1 = arith.constant 0 : i32
    return %arg0, %c0_i32, %c0_i32_0 : i32, i32, i32
  }
  func.func @transform_1(%arg0: i32) -> (i32, i32, i32) {
    %c0_i32 = arith.constant 0 : i32
    %c0_i32_0 = arith.constant 0 : i32
    %c0_i32_1 = arith.constant 0 : i32
    return %arg0, %c0_i32, %c0_i32_0 : i32, i32, i32
  }
  func.func @transform_2(%arg0: i32) -> (i32, i32, i32) {
    %c0_i32 = arith.constant 0 : i32
    %c0_i32_0 = arith.constant 0 : i32
    %c0_i32_1 = arith.constant 0 : i32
    return %arg0, %c0_i32, %c0_i32_0 : i32, i32, i32
  }
  func.func @transform_3(%arg0: i32) -> (i32, i32, i32) {
    %c0_i32 = arith.constant 0 : i32
    %c0_i32_0 = arith.constant 0 : i32
    %c0_i32_1 = arith.constant 0 : i32
    return %arg0, %c0_i32, %c0_i32_0 : i32, i32, i32
  }
  func.func @transform_4(%arg0: i32) -> (i32, i32) {
    %c0_i32 = arith.constant 0 : i32
    %c0_i32_0 = arith.constant 0 : i32
    %c0_i32_1 = arith.constant 0 : i32
    return %c0_i32, %c0_i32_0 : i32, i32
  }
  func.func @transform_5(%arg0: i32) -> (i32, i32) {
    %c0_i32 = arith.constant 0 : i32
    %c0_i32_0 = arith.constant 0 : i32
    %c0_i32_1 = arith.constant 0 : i32
    return %c0_i32, %c0_i32_0 : i32, i32
  }
}

</mosaic_0001>

<llo_original>
// kernel: tpu_custom_call.1
$region0: #{tpu_custom_call.1}
  #allocation0 [shape = 'u32[]', space=smem, size = 0x4, offset = 0x4, fixed_abs, tag = 'smem constant byte address 0x4 - core index']
  #allocation1 [shape = 'u32[144,128]{1,0:T(1,128)}', space=vmem, size = 0x12000, scoped, tag = 'internal scratch']
  %s0 = inlined_call_operand.vmem [shape: f32[2,8,128], index: 0, kind: input, shape index: {}]
  %s1 = inlined_call_operand.hbm [shape: f32[2,128,128], index: 1, kind: input, shape index: {}]
  %s2 = inlined_call_operand.vmem [shape: s32[2,8,1], index: 2, kind: input, shape index: {}]
  %s3 = inlined_call_operand.vmem [shape: f32[2,8,1], index: 3, kind: input, shape index: {}]
  %s4 = inlined_call_operand.vmem [shape: f32[1,128], index: 4, kind: input, shape index: {}]
  %s5 = inlined_call_operand.hbm [shape: f32[1,1], index: 5, kind: output, shape index: {}]
  %s6 = sld [smem:[#allocation0]]
  $region61: #{tpu_custom_call.1} parent=0
    _
  %s8 = ssub.s32 1, %s6
  %s9 = scalar_select 0, %s8, %s6
  $region1: #{tpu_custom_call.1} parent=0
    #allocation2 [shape = 'u8[131072]{0}', space=vmem, size = 0x20000, scoped, tag = 'input window, operand 1']
    #allocation3 [shape = 's32[2]{0}', space=sflag, size = 0x8, scoped, tag = 'scoped memory for tpu_custom_call.1']
    #allocation4 [shape = 's32[2]{0}', space=sflag, size = 0x8, scoped, tag = 'scoped memory for tpu_custom_call.1']
    #allocation5 [shape = 'u8[512]{0}', space=vmem, size = 0x400, scoped, tag = 'output window, operand 0, single buffered']
    %10 = vsyncpa [#allocation3], 0
    %s11 = scalar_lea.sflag [#allocation3], 1
    %12 = vsyncpa %s11, 0
    %13 = vsyncpa [#allocation4], 0
    loop: start=0, step=1, limit=4
    $region2: #{tpu_custom_call.1} parent=1 // loop_pre_header
      _
    $region3: #{tpu_custom_call.1} parent=1 // loop_header
      %s15 = sphi 0, %s19
      %p16 = scmp.ge.s32.totalorder %s15, 4
      %s25 = sphi 0, %s27
      %s28 = sphi 0, %s25
      %s29 = sphi 0, %s28
      %s45 = sphi 0, %s29
      %s51 = sphi 0, %s53
      %s54 = sphi 0, %s51
      %s55 = sphi 0, %s54
      %s71 = sphi 0, %s55
      %s77 = sphi 0, %s79
      %s80 = sphi 0, %s77
      %s81 = sphi 0, %s80
      %s97 = sphi 0, %s81
      %s103 = sphi 0, %s105
      %s106 = sphi 0, %s103
      %s107 = sphi 0, %s106
      %s123 = sphi 0, %s107
      %s127 = sphi 0, %s127
      %s129 = sphi 0, %s127
      %s130 = sphi 0, %s129
      %s144 = sphi 0, %s130
      %s148 = sphi 0, %s148
      %s150 = sphi 0, %s148
      %s151 = sphi 0, %s150
      %s165 = sphi 0, %s151
    $region4: #{tpu_custom_call.1} parent=1 // loop_header_branch
      %18 = sbr.rel (%p16) target = $region8
    $region5: #{tpu_custom_call.1} parent=1 // loop_body
      %s20 = ssub.s32 %s15, 1
      %s21 = ssub.s32 %s15, 2
      %s22 = sadd.s32 %s15, 1
      %s23 = ssub.s32 %s15, %s22
      %p24 = scmp.eq.s32.totalorder %s23, 0
      %s26 = sadd.s32 %s25, 1
      %s27 = scalar_select %p24, %s25, %s26
      %p30 = pneg %p24
      %p31 = scmp.eq.s32.totalorder %s15, 1
      %p32 = por %p30, %p31
      %p33 = scmp.ne.s32.totalorder %s25, %s28
      %p34 = scmp.eq.s32.totalorder %s15, 0
      %p35 = por %p33, %p34
      %p36 = scmp.ne.s32.totalorder %s25, %s28
      %p37 = scmp.eq.s32.totalorder %s20, 1
      %p38 = por %p36, %p37
      %p39 = scmp.ne.s32.totalorder %s28, %s29
      %p40 = scmp.eq.s32.totalorder %s20, 0
      %p41 = por %p39, %p40
      %p42 = scmp.ne.s32.totalorder %s28, %s29
      %p43 = scmp.eq.s32.totalorder %s21, 1
      %p44 = por %p42, %p43
      %p46 = scmp.ne.s32.totalorder %s29, %s45
      %p47 = scmp.eq.s32.totalorder %s21, 0
      %p48 = por %p46, %p47
      %s49 = ssub.s32 %s15, %s22
      %p50 = scmp.eq.s32.totalorder %s49, 0
      %s52 = sadd.s32 %s51, 1
      %s53 = scalar_select %p50, %s51, %s52
      %p56 = pneg %p50
      %p57 = scmp.eq.s32.totalorder %s15, 1
      %p58 = por %p56, %p57
      %p59 = scmp.ne.s32.totalorder %s51, %s54
      %p60 = scmp.eq.s32.totalorder %s15, 0
      %p61 = por %p59, %p60
      %p62 = scmp.ne.s32.totalorder %s51, %s54
      %p63 = scmp.eq.s32.totalorder %s20, 1
      %p64 = por %p62, %p63
      %p65 = scmp.ne.s32.totalorder %s54, %s55
      %p66 = scmp.eq.s32.totalorder %s20, 0
      %p67 = por %p65, %p66
      %p68 = scmp.ne.s32.totalorder %s54, %s55
      %p69 = scmp.eq.s32.totalorder %s21, 1
      %p70 = por %p68, %p69
      %p72 = scmp.ne.s32.totalorder %s55, %s71
      %p73 = scmp.eq.s32.totalorder %s21, 0
      %p74 = por %p72, %p73
      %s75 = ssub.s32 %s15, %s22
      %p76 = scmp.eq.s32.totalorder %s75, 0
      %s78 = sadd.s32 %s77, 1
      %s79 = scalar_select %p76, %s77, %s78
      %p82 = pneg %p76
      %p83 = scmp.eq.s32.totalorder %s15, 1
      %p84 = por %p82, %p83
      %p85 = scmp.ne.s32.totalorder %s77, %s80
      %p86 = scmp.eq.s32.totalorder %s15, 0
      %p87 = por %p85, %p86
      %p88 = scmp.ne.s32.totalorder %s77, %s80
      %p89 = scmp.eq.s32.totalorder %s20, 1
      %p90 = por %p88, %p89
      %p91 = scmp.ne.s32.totalorder %s80, %s81
      %p92 = scmp.eq.s32.totalorder %s20, 0
      %p93 = por %p91, %p92
      %p94 = scmp.ne.s32.totalorder %s80, %s81
      %p95 = scmp.eq.s32.totalorder %s21, 1
      %p96 = por %p94, %p95
      %p98 = scmp.ne.s32.totalorder %s81, %s97
      %p99 = scmp.eq.s32.totalorder %s21, 0
      %p100 = por %p98, %p99
      %s101 = ssub.s32 %s15, %s22
      %p102 = scmp.eq.s32.totalorder %s101, 0
      %s104 = sadd.s32 %s103, 1
      %s105 = scalar_select %p102, %s103, %s104
      %p108 = pneg %p102
      %p109 = scmp.eq.s32.totalorder %s15, 1
      %p110 = por %p108, %p109
      %p111 = scmp.ne.s32.totalorder %s103, %s106
      %p112 = scmp.eq.s32.totalorder %s15, 0
      %p113 = por %p111, %p112
      %p114 = scmp.ne.s32.totalorder %s103, %s106
      %p115 = scmp.eq.s32.totalorder %s20, 1
      %p116 = por %p114, %p115
      %p117 = scmp.ne.s32.totalorder %s106, %s107
      %p118 = scmp.eq.s32.totalorder %s20, 0
      %p119 = por %p117, %p118
      %p120 = scmp.ne.s32.totalorder %s106, %s107
      %p121 = scmp.eq.s32.totalorder %s21, 1
      %p122 = por %p120, %p121
      %p124 = scmp.ne.s32.totalorder %s107, %s123
      %p125 = scmp.eq.s32.totalorder %s21, 0
      %p126 = por %p124, %p125
      %s128 = sadd.s32 %s127, 1
      %p131 = scmp.eq.s32.totalorder %s15, 1
      %p132 = scmp.ne.s32.totalorder %s127, %s129
      %p133 = scmp.eq.s32.totalorder %s15, 0
      %p134 = por %p132, %p133
      %p135 = scmp.ne.s32.totalorder %s127, %s129
      %p136 = scmp.eq.s32.totalorder %s20, 1
      %p137 = por %p135, %p136
      %p138 = scmp.ne.s32.totalorder %s129, %s130
      %p139 = scmp.eq.s32.totalorder %s20, 0
      %p140 = por %p138, %p139
      %p141 = scmp.ne.s32.totalorder %s129, %s130
      %p142 = scmp.eq.s32.totalorder %s21, 1
      %p143 = por %p141, %p142
      %p145 = scmp.ne.s32.totalorder %s130, %s144
      %p146 = scmp.eq.s32.totalorder %s21, 0
      %p147 = por %p145, %p146
      %s149 = sadd.s32 %s148, 1
      %p152 = scmp.eq.s32.totalorder %s15, 1
      %p153 = scmp.ne.s32.totalorder %s148, %s150
      %p154 = scmp.eq.s32.totalorder %s15, 0
      %p155 = por %p153, %p154
      %p156 = scmp.ne.s32.totalorder %s148, %s150
      %p157 = scmp.eq.s32.totalorder %s20, 1
      %p158 = por %p156, %p157
      %p159 = scmp.ne.s32.totalorder %s150, %s151
      %p160 = scmp.eq.s32.totalorder %s20, 0
      %p161 = por %p159, %p160
      %p162 = scmp.ne.s32.totalorder %s150, %s151
      %p163 = scmp.eq.s32.totalorder %s21, 1
      %p164 = por %p162, %p163
      %p166 = scmp.ne.s32.totalorder %s151, %s165
      %p167 = scmp.eq.s32.totalorder %s21, 0
      %p168 = por %p166, %p167
      %p169 = scmp.le.s32.totalorder 1, %s15
      %p170 = scmp.lt.s32.totalorder %s15, 3
      %p171 = pnand %p169, %p170
      %p172 = pneg %p171
      // Predicated region
      $region9: #{tpu_custom_call.1} parent=5 // pred_check
        _
      $region10: #{tpu_custom_call.1} parent=5 // pred_check_branch
        %174 = sbr.rel (%p171) target = $region12
      $region11: #{tpu_custom_call.1} parent=5 // pred_region
        %s175 = ssub.s32 %s15, 1
        // Predicated region
        $region13: #{tpu_custom_call.1} parent=11 // pred_check
          %p176 = pneg %p140
        $region14: #{tpu_custom_call.1} parent=11 // pred_check_branch
          %178 = sbr.rel (%p176) target = $region16
        $region15: #{tpu_custom_call.1} parent=11 // pred_region
          _
        $region16: #{tpu_custom_call.1} parent=11 // pred_fallthru
          _
      $region12: #{tpu_custom_call.1} parent=5 // pred_fallthru
        _
      %p179 = scmp.lt.s32.totalorder %s15, 2
      // Predicated region
      $region17: #{tpu_custom_call.1} parent=5 // pred_check
        %p180 = pneg %p179
      $region18: #{tpu_custom_call.1} parent=5 // pred_check_branch
        %182 = sbr.rel (%p180) target = $region20
      $region19: #{tpu_custom_call.1} parent=5 // pred_region
        // Predicated region
        $region21: #{tpu_custom_call.1} parent=19 // pred_check
          %p183 = pneg %p35
        $region22: #{tpu_custom_call.1} parent=19 // pred_check_branch
          %185 = sbr.rel (%p183) target = $region24
        $region23: #{tpu_custom_call.1} parent=19 // pred_region
          %p186 = scmp.lt.s32.totalorder %s15, 1
          %s187 = scalar_select %p186, %s15, 1
          %s188 = smul.addr %s187, 8
          %s189 = scalar_lea.vmem %s0, %s188
        $region24: #{tpu_custom_call.1} parent=19 // pred_fallthru
          _
        // Predicated region
        $region25: #{tpu_custom_call.1} parent=19 // pred_check
          %p190 = pneg %p61
        $region26: #{tpu_custom_call.1} parent=19 // pred_check_branch
          %192 = sbr.rel (%p190) target = $region28
        $region27: #{tpu_custom_call.1} parent=19 // pred_region
          %s193 = sand.u32 %s51, 1
          %s194 = scalar_lea.sflag [#allocation3], %s193
          %s195 = sand.u32 %s51, 1
          %s196 = smul.addr %s195, 128
          %s197 = scalar_lea.vmem [#allocation2], %s196
          %s199 = ssub.s32 2048, 2048
          %200 = vsyncadd %s194, %s199
          %s201 = smul.addr %s15, 16
          %s202 = smul.addr %s201, 128
          %s203 = scalar_lea.hbm %s1, %s202
          %s204 = sshll.u32 %s197, 4
          %s205 = int_to_ptr.vmem [resolvable:$true] %s204
          %210 = dma.hbm_to_vmem [thread:$0]  %s203, 2048, %s205, %s194, 128, 128, 8
        $region28: #{tpu_custom_call.1} parent=19 // pred_fallthru
          _
        // Predicated region
        $region29: #{tpu_custom_call.1} parent=19 // pred_check
          %p211 = pneg %p87
        $region30: #{tpu_custom_call.1} parent=19 // pred_check_branch
          %213 = sbr.rel (%p211) target = $region32
        $region31: #{tpu_custom_call.1} parent=19 // pred_region
          %p214 = scmp.lt.s32.totalorder %s15, 1
          %s215 = scalar_select %p214, %s15, 1
          %s216 = smul.addr %s215, 8
          %s217 = scalar_lea.vmem %s2, %s216
        $region32: #{tpu_custom_call.1} parent=19 // pred_fallthru
          _
        // Predicated region
        $region33: #{tpu_custom_call.1} parent=19 // pred_check
          %p218 = pneg %p113
        $region34: #{tpu_custom_call.1} parent=19 // pred_check_branch
          %220 = sbr.rel (%p218) target = $region36
        $region35: #{tpu_custom_call.1} parent=19 // pred_region
          %p221 = scmp.lt.s32.totalorder %s15, 1
          %s222 = scalar_select %p221, %s15, 1
          %s223 = smul.addr %s222, 8
          %s224 = scalar_lea.vmem %s3, %s223
        $region36: #{tpu_custom_call.1} parent=19 // pred_fallthru
          _
      $region20: #{tpu_custom_call.1} parent=5 // pred_fallthru
        _
      %p225 = scmp.le.s32.totalorder 1, %s15
      %p226 = scmp.lt.s32.totalorder %s15, 3
      %p227 = pnand %p225, %p226
      %p228 = pneg %p227
      // Predicated region
      $region37: #{tpu_custom_call.1} parent=5 // pred_check
        _
      $region38: #{tpu_custom_call.1} parent=5 // pred_check_branch
        %230 = sbr.rel (%p227) target = $region40
      $region39: #{tpu_custom_call.1} parent=5 // pred_region
        %s231 = ssub.s32 %s15, 1
        %s232 = sand.u32 %s54, 1
        %s233 = scalar_lea.sflag [#allocation3], %s232
        %s234 = sand.u32 %s54, 1
        %s235 = smul.addr %s234, 128
        %s236 = scalar_lea.vmem [#allocation2], %s235
        // Predicated region
        $region41: #{tpu_custom_call.1} parent=39 // pred_check
          %p237 = pneg %p67
        $region42: #{tpu_custom_call.1} parent=39 // pred_check_branch
          %239 = sbr.rel (%p237) target = $region44
        $region43: #{tpu_custom_call.1} parent=39 // pred_region
          %240 = dma.done %s233, 2048
        $region44: #{tpu_custom_call.1} parent=39 // pred_fallthru
          _
        %p241 = scmp.lt.s32.totalorder %s20, 1
        %s242 = scalar_select %p241, %s20, 1
        %s243 = smul.addr %s242, 8
        %s244 = scalar_lea.vmem %s0, %s243
        %p245 = pneg %p41
        %p246 = pneg %p38
        %s247 = sand.u32 %s54, 1
        %s248 = scalar_lea.sflag [#allocation3], %s247
        %s249 = sand.u32 %s54, 1
        %s250 = smul.addr %s249, 128
        %s251 = scalar_lea.vmem [#allocation2], %s250
        %p252 = pneg %p67
        %p253 = pneg %p64
        %p254 = scmp.lt.s32.totalorder %s20, 1
        %s255 = scalar_select %p254, %s20, 1
        %s256 = smul.addr %s255, 8
        %s257 = scalar_lea.vmem %s2, %s256
        %p258 = pneg %p93
        %p259 = pneg %p90
        %p260 = scmp.lt.s32.totalorder %s20, 1
        %s261 = scalar_select %p260, %s20, 1
        %s262 = smul.addr %s261, 8
        %s263 = scalar_lea.vmem %s3, %s262
        %p264 = pneg %p119
        %p265 = pneg %p116
        %p266 = pneg %p140
        %p267 = pneg %p137
        %p268 = pneg %p161
        %p269 = pneg %p158
        %p270 = scmp.lt.s32.totalorder %s20, 1
        %s271 = scalar_select %p270, %s20, 1
        %s272 = smul.addr %s271, 8
        %s273 = scalar_lea.vmem %s0, %s272
        %p274 = scmp.lt.s32.totalorder %s20, 1
        %s275 = scalar_select %p274, %s20, 1
        %s276 = smul.addr %s275, 8
        %s277 = scalar_lea.vmem %s2, %s276
        %p278 = scmp.lt.s32.totalorder %s20, 1
        %s279 = scalar_select %p278, %s20, 1
        %s280 = smul.addr %s279, 8
        %s281 = scalar_lea.vmem %s3, %s280
        %p283 = scmp.eq.s32.totalorder %s20, 0
        // Predicated region
        $region45: #{tpu_custom_call.1} parent=39 // pred_check
          %p284 = pneg %p283
        $region46: #{tpu_custom_call.1} parent=39 // pred_check_branch
          %286 = sbr.rel (%p284) target = $region48
        $region47: #{tpu_custom_call.1} parent=39 // pred_region
          %vm287 = vcmask 0
          %288 = vst.msk [vmem:[#allocation5] sm:$0x1] %vm287, 0.0
        $region48: #{tpu_custom_call.1} parent=39 // pred_fallthru
          _
        %v289 = vld [vmem:[%s273] sm:$0xff]
        %v290 = vld [vmem:[%s236] sm:$0xff]
        %v291 = vld [vmem:[%s236 + $0x8] sm:$0xff]
        %v292 = vld [vmem:[%s236 + $0x10] sm:$0xff]
        %v293 = vld [vmem:[%s236 + $0x18] sm:$0xff]
        %v294 = vld [vmem:[%s236 + $0x20] sm:$0xff]
        %v295 = vld [vmem:[%s236 + $0x28] sm:$0xff]
        %v296 = vld [vmem:[%s236 + $0x30] sm:$0xff]
        %v297 = vld [vmem:[%s236 + $0x38] sm:$0xff]
        %v298 = vld [vmem:[%s236 + $0x40] sm:$0xff]
        %v299 = vld [vmem:[%s236 + $0x48] sm:$0xff]
        %v300 = vld [vmem:[%s236 + $0x50] sm:$0xff]
        %v301 = vld [vmem:[%s236 + $0x58] sm:$0xff]
        %v302 = vld [vmem:[%s236 + $0x60] sm:$0xff]
        %v303 = vld [vmem:[%s236 + $0x68] sm:$0xff]
        %v304 = vld [vmem:[%s236 + $0x70] sm:$0xff]
        %v305 = vld [vmem:[%s236 + $0x78] sm:$0xff]
        %v306 = vmul.f32 %v289, %v289
        %307 = vadd.xlane.f32.xlu0 %v306
        %v308 = vpop.xlane.xlu0 %307
        %v309 = vmax.f32 %v308, 1e-24
        %v310 = vrsqrt.pop %v309
        %v311 = vmul.f32 %v289, %v310
        %v312 = vmul.f32 %v290, %v290
        %v313 = vmul.f32 %v291, %v291
        %v314 = vmul.f32 %v292, %v292
        %v315 = vmul.f32 %v293, %v293
        %v316 = vmul.f32 %v294, %v294
        %v317 = vmul.f32 %v295, %v295
        %v318 = vmul.f32 %v296, %v296
        %v319 = vmul.f32 %v297, %v297
        %v320 = vmul.f32 %v298, %v298
        %v321 = vmul.f32 %v299, %v299
        %v322 = vmul.f32 %v300, %v300
        %v323 = vmul.f32 %v301, %v301
        %v324 = vmul.f32 %v302, %v302
        %v325 = vmul.f32 %v303, %v303
        %v326 = vmul.f32 %v304, %v304
        %v327 = vmul.f32 %v305, %v305
        %v328 = vadd.f32 %v312, %v313
        %v329 = vadd.f32 %v328, %v314
        %v330 = vadd.f32 %v329, %v315
        %v331 = vadd.f32 %v330, %v316
        %v332 = vadd.f32 %v331, %v317
        %v333 = vadd.f32 %v332, %v318
        %v334 = vadd.f32 %v333, %v319
        %v335 = vadd.f32 %v334, %v320
        %v336 = vadd.f32 %v335, %v321
        %v337 = vadd.f32 %v336, %v322
        %v338 = vadd.f32 %v337, %v323
        %v339 = vadd.f32 %v338, %v324
        %v340 = vadd.f32 %v339, %v325
        %v341 = vadd.f32 %v340, %v326
        %v342 = vadd.f32 %v341, %v327
        %v343 = vrot.slane %v342, 4
        %v344 = vadd.f32 %v342, %v343
        %v345 = vrot.slane %v344, 2
        %v346 = vadd.f32 %v344, %v345
        %v347 = vrot.slane %v346, 1
        %v348 = vadd.f32 %v346, %v347
        %v349 = vmax.f32 %v348, 1e-24
        %v350 = vrsqrt.pop %v349
        %v351 = vmul.f32 %v290, %v350
        %v352 = vmul.f32 %v291, %v350
        %v353 = vmul.f32 %v292, %v350
        %v354 = vmul.f32 %v293, %v350
        %v355 = vmul.f32 %v294, %v350
        %v356 = vmul.f32 %v295, %v350
        %v357 = vmul.f32 %v296, %v350
        %v358 = vmul.f32 %v297, %v350
        %v359 = vmul.f32 %v298, %v350
        %v360 = vmul.f32 %v299, %v350
        %v361 = vmul.f32 %v300, %v350
        %v362 = vmul.f32 %v301, %v350
        %v363 = vmul.f32 %v302, %v350
        %v364 = vmul.f32 %v303, %v350
        %v365 = vmul.f32 %v304, %v350
        %v366 = vmul.f32 %v305, %v350
        %v367 = vpack.c.bf16 %v311, %v311
        %v368 = vpack.c.bf16 %v352, %v351
        %v369 = vpack.c.bf16 %v354, %v353
        %v370 = vpack.c.bf16 %v356, %v355
        %v371 = vpack.c.bf16 %v358, %v357
        %v372 = vpack.c.bf16 %v360, %v359
        %v373 = vpack.c.bf16 %v362, %v361
        %v374 = vpack.c.bf16 %v364, %v363
        %v375 = vpack.c.bf16 %v366, %v365
        %376 = vmatprep.subr.bf16.mxu0 0
        %377 = vmatpush1.bf16.msra.mxu0 %v368
        %378 = vmatprep.subr.bf16.mxu0 0
        %379 = vmatpush1.bf16.msra.mxu0 %v369
        %380 = vmatprep.subr.bf16.mxu0 0
        %381 = vmatpush1.bf16.msra.mxu0 %v370
        %382 = vmatprep.subr.bf16.mxu0 0
        %383 = vmatpush1.bf16.msra.mxu0 %v371
        %384 = vmatprep.subr.bf16.mxu0 0
        %385 = vmatpush1.bf16.msra.mxu0 %v372
        %386 = vmatprep.subr.bf16.mxu0 0
        %387 = vmatpush1.bf16.msra.mxu0 %v373
        %388 = vmatprep.subr.bf16.mxu0 0
        %389 = vmatpush1.bf16.msra.mxu0 %v374
        %390 = vmatprep.subr.bf16.mxu0 0
        %391 = vmatpush1.bf16.msra.mxu0 %v375
        %392 = vmatprep.subr.bf16.mxu0 0
        %393 = vmatpush1.bf16.msra.mxu0 0
        %394 = vmatprep.subr.bf16.mxu0 0
        %395 = vmatpush1.bf16.msra.mxu0 0
        %396 = vmatprep.subr.bf16.mxu0 0
        %397 = vmatpush1.bf16.msra.mxu0 0
        %398 = vmatprep.subr.bf16.mxu0 0
        %399 = vmatpush1.bf16.msra.mxu0 0
        %400 = vmatprep.subr.bf16.mxu0 0
        %401 = vmatpush1.bf16.msra.mxu0 0
        %402 = vmatprep.subr.bf16.mxu0 0
        %403 = vmatpush1.bf16.msra.mxu0 0
        %404 = vmatprep.subr.bf16.mxu0 0
        %405 = vmatpush1.bf16.msra.mxu0 0
        %406 = vmatprep.subr.bf16.mxu0 0
        %407 = vmatpush1.bf16.msra.mxu0 0
        %408 = vmatprep.mubr.bf16.mxu0 0
        %409 = vmatmul.mubr.bf16.gmra.mrb[0].mxu0 %v367
        %v410 = vpop.f32.mrb[0].mxu0
        %v411 = vadd.f32 0.0, %v410
        %v412 = vpop.f32.mrb[0].mxu0
        %v413 = vpop.f32.mrb[0].mxu0
        %v414 = vpop.f32.mrb[0].mxu0
        %415 = vdwg.mxu0
        %v416 = vmul.f32 %v411, 10.0
        %v417 = vld [vmem:[%s4] sm:$0x1]
        %v419 = vlaneseq
        %v420 = vshrl.u32 %v419, 7
        %v421 = vsub.s32 0, %v420
        %v422 = vrot.slane %v417, %v421
        %v424 = vadd.f32 %v416, %v422
        %425 = vmax.xlane.f32.xlu0 %v424
        %v426 = vpop.xlane.xlu0 %425
        %v427 = vsub.f32 %v424, %v426
        %v428 = vmul.f32 %v427, 1.442695
        %v429 = vpow.pop %v428
        %430 = vadd.xlane.f32.xlu0 %v429
        %v431 = vpop.xlane.xlu0 %430
        %v432 = vlog2.pop %v431
        %v433 = vmul.f32 %v432, 0.6931472
        %v434 = vadd.f32 %v426, %v433
        %v435 = vlaneseq
        %v436 = vand.u32 %v435, 127
        %v437 = vld [vmem:[%s277] sm:$0xff]
        %438 = vset.pattern.permute.xlu0 0
        %439 = vperm.xlu0 %438, %v437
        %v440 = vpop.permute.xlu0 %439
        %vm441 = vcmp.eq.s32.totalorder %v436, %v440
        %v442 = vsel %vm441, 1, 0
        %v443 = vcvt.s32.f32 %v442
        %v444 = vmul.f32 %v424, %v443
        %445 = vadd.xlane.f32.xlu0 %v444
        %v446 = vpop.xlane.xlu0 %445
        %v447 = vsub.f32 %v434, %v446
        %v448 = vld [vmem:[#allocation5] sm:$0x1]
        %v449 = vld [vmem:[%s281] sm:$0xff]
        %v450 = vmul.f32 %v447, %v449
        %vm451 = vcmask 7168
        %v452 = vsel %vm451, %v450, 0.0
        %453 = vadd.xlane.f32.xlu0 %v452
        %v454 = vpop.xlane.xlu0 %453
        %v455 = vrot.slane %v454, 4
        %v456 = vadd.f32 %v454, %v455
        %v457 = vrot.slane %v456, 2
        %v458 = vadd.f32 %v456, %v457
        %v459 = vrot.slane %v458, 1
        %v460 = vadd.f32 %v458, %v459
        %s461 = vtos %v460
        %v462 = vstv %s461
        %v463 = vadd.f32 %v448, %v462
        %vm464 = vcmask 0
        %465 = vst.msk [vmem:[#allocation5] sm:$0x1] %vm464, %v463
        // Predicated region
        $region49: #{tpu_custom_call.1} parent=39 // pred_check
          %p466 = pneg %p158
        $region50: #{tpu_custom_call.1} parent=39 // pred_check_branch
          %468 = sbr.rel (%p466) target = $region52
        $region51: #{tpu_custom_call.1} parent=39 // pred_region
          %s470 = ssub.s32 16, 16
          %471 = vsyncadd [#allocation4], %s470
          %s473 = sshll.u32 [#allocation5], 4
          %s474 = int_to_ptr.vmem [resolvable:$true] %s473
          %476 = dma.vmem_to_hbm [thread:$0]  %s474, 16, %s5, [#allocation4]
        $region52: #{tpu_custom_call.1} parent=39 // pred_fallthru
          _
        // Predicated region
        $region53: #{tpu_custom_call.1} parent=39 // pred_check
          %p477 = pneg %p158
        $region54: #{tpu_custom_call.1} parent=39 // pred_check_branch
          %479 = sbr.rel (%p477) target = $region56
        $region55: #{tpu_custom_call.1} parent=39 // pred_region
          %480 = dma.done [#allocation4], 16
        $region56: #{tpu_custom_call.1} parent=39 // pred_fallthru
          _
      $region40: #{tpu_custom_call.1} parent=5 // pred_fallthru
        _
      %p481 = scmp.le.s32.totalorder 2, %s15
      // Predicated region
      $region57: #{tpu_custom_call.1} parent=5 // pred_check
        %p482 = pneg %p481
      $region58: #{tpu_custom_call.1} parent=5 // pred_check_branch
        %484 = sbr.rel (%p482) target = $region60
      $region59: #{tpu_custom_call.1} parent=5 // pred_region
        %s485 = ssub.s32 %s15, 2
      $region60: #{tpu_custom_call.1} parent=5 // pred_fallthru
        _
    $region6: #{tpu_custom_call.1} parent=1 // loop_footer
      %s19 = sadd.s32 1, %s15
    $region7: #{tpu_custom_call.1} parent=1 // loop_footer_branch
      %14 = sbr.rel target = $region3
    $region8: #{tpu_custom_call.1} parent=1 // loop_exit
      _
    %486 = vsyncpa [#allocation3], 1
    %s487 = scalar_lea.sflag [#allocation3], 1
    %488 = vsyncpa %s487, 1
    %489 = vsyncpa [#allocation4], 1
    %s490 = scalar_lea.sflag [#allocation4], 1
    %491 = vsyncpa %s490, 1

</llo_original>
